<compile_context>
chip_gen: v6e
topology: v6e:2x2x1
jax: 0.10.0
libtpu: 0.0.40
codegen_flags: <defaults>
</compile_context>

<pallas_src>
import jax
import jax.numpy as jnp
from jax.experimental import pallas as pl
from jax.experimental.pallas import tpu as pltpu

# TODO(synk): base_model (HuggingFace AutoModel) is not reproduced; its
# last_hidden_state is supplied directly instead of (input_ids, attention_mask).

HIDDEN = 32          # stand-in for base_model.config.hidden_size
D_DEMO = 5
D_EMP = 2
D_TEXT_PROJ = 16
D_DEMO_PROJ = 16
D_EMP_PROJ = 8
D_COMBINED = D_TEXT_PROJ + D_DEMO_PROJ + D_EMP_PROJ      # 40 (internal, folded away)
D_PERS = 5
D_IRI = 4
D_IN = HIDDEN + D_DEMO + D_EMP                           # 39  (kernel input lanes)
D_OUT = D_PERS + D_IRI                                   # 9   (kernel output lanes)

# Batch tile: multiple of 8 (f32 sublane); capped so double-buffered
# (TILE_B, 39->128 padded) f32 input + output tiles fit comfortably inside
# v7x's 64 MiB VMEM (and v5e/v6e's 128 MiB) with large headroom.
TILE_B_MAX = 2048


def _round_up(x, m):
    return ((x + m - 1) // m) * m


def _fused_affine_kernel(x_ref, w_ref, b_ref, out_ref):
    # x_ref: (TILE_B, 39)  w_ref: (39, 9)  b_ref: (1, 9)  out_ref: (TILE_B, 9)
    out = jnp.dot(x_ref[...], w_ref[...],
                  preferred_element_type=jnp.float32) + b_ref[...]
    out_ref[...] = out.astype(out_ref.dtype)


def _fold_params(p):
    """Collapse the 5 Linear layers into one (39, 9) affine map (trace time).

    Valid only because the torch module has no activation between the fc_*
    projections and the output heads.
    """
    w_heads = jnp.concatenate([p["w_pers"], p["w_iri"]], axis=1)      # (40, 9)
    b_heads = jnp.concatenate([p["b_pers"], p["b_iri"]], axis=1)      # (1, 9)

    # combined = [text(0:16) | demo(16:32) | emp(32:40)]
    w_big = jnp.concatenate([
        p["w_text"] @ w_heads[0:D_TEXT_PROJ, :],                       # (32, 9)
        p["w_demo"] @ w_heads[D_TEXT_PROJ:D_TEXT_PROJ + D_DEMO_PROJ, :],  # (5, 9)
        p["w_emp"] @ w_heads[D_TEXT_PROJ + D_DEMO_PROJ:D_COMBINED, :],    # (2, 9)
    ], axis=0)                                                         # (39, 9)

    b_proj = jnp.concatenate([p["b_text"], p["b_demo"], p["b_emp"]], axis=1)  # (1, 40)
    b_big = b_proj @ w_heads + b_heads                                 # (1, 9)
    return w_big, b_big


def personality_forward(last_hidden_state, demographics, empathy_distress, params,
                        *, tile_b_max=TILE_B_MAX, transfer_dtype=jnp.float32):
    """last_hidden_state: (B, S, H) f32; demographics: (B, 5); empathy_distress: (B, 2).

    transfer_dtype=jnp.bfloat16 halves HBM traffic for the (mem-bound) input
    slab; the MXU still accumulates in f32. Default f32 for exact verification.
    """
    # CLS token + lane-concat into a single (B, 39) slab (one DMA stream,
    # one matmul operand) instead of three sub-lane-width operands.
    cls = last_hidden_state[:, 0, :]                                   # (B, H)
    x = jnp.concatenate([cls, demographics, empathy_distress], axis=1)  # (B, 39)
    B = x.shape[0]

    w_big, b_big = _fold_params(params)

    x = x.astype(transfer_dtype)
    w_big = w_big.astype(transfer_dtype)
    b_big = b_big.astype(jnp.float32)

    # Batch tiling: tile is a multiple of 8 (f32 sublane); pad B up so every
    # grid step sees a full, aligned tile (padded rows are sliced off below).
    tile_b = min(tile_b_max, _round_up(B, 8))
    b_pad = _round_up(B, tile_b)
    if b_pad != B:
        x = jnp.pad(x, ((0, b_pad - B), (0, 0)))

    grid = (b_pad // tile_b,)

    out = pl.pallas_call(
        _fused_affine_kernel,
        out_shape=jax.ShapeDtypeStruct((b_pad, D_OUT), jnp.float32),
        grid_spec=pltpu.PrefetchScalarGridSpec(
            num_scalar_prefetch=0,
            grid=grid,
            in_specs=[
                # activations: tiled over batch, pipelined / double-buffered
                pl.BlockSpec((tile_b, D_IN), lambda i: (i, 0)),
                # folded weight + bias: constant block index -> stays resident
                pl.BlockSpec((D_IN, D_OUT), lambda i: (0, 0)),
                pl.BlockSpec((1, D_OUT), lambda i: (0, 0)),
            ],
            # single lane-packed output (pers|iri) -> one store per tile
            out_specs=pl.BlockSpec((tile_b, D_OUT), lambda i: (i, 0)),
        ),
        compiler_params=pltpu.CompilerParams(
            dimension_semantics=("parallel",),
        ),
    )(x, w_big, b_big)

    out = out[:B]
    return out[:, :D_PERS], out[:, D_PERS:]


def init_params(key):
    """Deterministic parameter init matching the torch module's Linear shapes.

    Weights are stored (in_features, out_features); biases as (1, out_features),
    so x @ W + b is numerically identical to torch.nn.Linear's x @ W.T + b.
    """
    keys = jax.random.split(key, 10)

    def lin(kw, kb, d_in, d_out):
        scale = 1.0 / jnp.sqrt(jnp.float32(d_in))
        w = jax.random.uniform(kw, (d_in, d_out), jnp.float32, -scale, scale)
        b = jax.random.uniform(kb, (1, d_out), jnp.float32, -scale, scale)
        return w, b

    w_text, b_text = lin(keys[0], keys[1], HIDDEN, D_TEXT_PROJ)      # fc_text
    w_demo, b_demo = lin(keys[2], keys[3], D_DEMO, D_DEMO_PROJ)      # fc_demographics
    w_emp, b_emp = lin(keys[4], keys[5], D_EMP, D_EMP_PROJ)          # fc_empathy_distress
    w_pers, b_pers = lin(keys[6], keys[7], D_COMBINED, D_PERS)       # fc_out_personality
    w_iri, b_iri = lin(keys[8], keys[9], D_COMBINED, D_IRI)          # fc_out_iri

    return dict(w_text=w_text, b_text=b_text,
                w_demo=w_demo, b_demo=b_demo,
                w_emp=w_emp, b_emp=b_emp,
                w_pers=w_pers, b_pers=b_pers,
                w_iri=w_iri, b_iri=b_iri)


def _reference_forward(last_hidden_state, demographics, empathy_distress, p):
    """Pure-JAX reference of the original (unfused) math, for correctness."""
    t = last_hidden_state[:, 0, :] @ p["w_text"] + p["b_text"]
    d = demographics @ p["w_demo"] + p["b_demo"]
    e = empathy_distress @ p["w_emp"] + p["b_emp"]
    combined = jnp.concatenate([t, d, e], axis=1)
    pers = combined @ p["w_pers"] + p["b_pers"]
    iri = combined @ p["w_iri"] + p["b_iri"]
    return pers, iri


if __name__ == "__main__":
    key = jax.random.PRNGKey(0)
    k_params, k_lhs, k_demo, k_emp = jax.random.split(key, 4)

    B, S = 2, 8
    params = init_params(k_params)

    # Synthetic base-model output (what AutoModel would produce).
    last_hidden_state = jax.random.normal(k_lhs, (B, S, HIDDEN), jnp.float32)
    demographics = jax.random.normal(k_demo, (B, D_DEMO), jnp.float32)
    empathy_distress = jax.random.normal(k_emp, (B, D_EMP), jnp.float32)

    fwd = jax.jit(personality_forward)
    pers, iri = fwd(last_hidden_state, demographics, empathy_distress, params)
    jax.block_until_ready((pers, iri))

    ref_pers, ref_iri = _reference_forward(last_hidden_state, demographics,
                                           empathy_distress, params)
    assert pers.shape == (B, D_PERS) and iri.shape == (B, D_IRI)
    # Slightly looser tolerance than before: the trace-time weight fold
    # reassociates the fp contraction order (differences ~1e-6).
    assert jnp.allclose(pers, ref_pers, atol=1e-4, rtol=1e-4)
    assert jnp.allclose(iri, ref_iri, atol=1e-4, rtol=1e-4)

    print("KERNEL_OK")
</pallas_src>

<mosaic_0001>
module attributes {stable_mosaic.version = 11 : i64} {
  func.func @_fused_affine_kernel(%arg0: i32, %arg1: memref<8x39xf32, #tpu.memory_space<vmem>>, %arg2: memref<39x9xf32, #tpu.memory_space<vmem>>, %arg3: memref<1x9xf32, #tpu.memory_space<vmem>>, %arg4: memref<8x9xf32, #tpu.memory_space<vmem>>) attributes {dimension_semantics = [#tpu.dimension_semantics<parallel>], iteration_bounds = array<i64: 1>, scalar_prefetch = 0 : i64, scratch_operands = 0 : i64, tpu.core_type = #tpu.core_type<tc>, window_params = [{transform_indices = @transform_0, window_bounds = array<i64: 8, 39>}, {pipeline_mode = #tpu.pipeline_mode<synchronous>, transform_indices = @transform_1, window_bounds = array<i64: 39, 9>}, {pipeline_mode = #tpu.pipeline_mode<synchronous>, transform_indices = @transform_2, window_bounds = array<i64: 1, 9>}, {transform_indices = @transform_3, window_bounds = array<i64: 8, 9>}]} {
    %c0 = arith.constant 0 : index
    %c0_0 = arith.constant 0 : index
    %0 = vector.load %arg1[%c0, %c0_0] : memref<8x39xf32, #tpu.memory_space<vmem>>, vector<8x39xf32>
    %c0_1 = arith.constant 0 : index
    %c0_2 = arith.constant 0 : index
    %1 = vector.load %arg2[%c0_1, %c0_2] : memref<39x9xf32, #tpu.memory_space<vmem>>, vector<39x9xf32>
    %cst = arith.constant dense<0.000000e+00> : vector<8x9xf32>
    %2 = tpu.matmul %0, %1, %cst {dimension_numbers = #tpu.dot_dimension_numbers<[1], [0], [0], [1], [0, 0, 1, 1], [], []>} : vector<8x39xf32>, vector<39x9xf32>, vector<8x9xf32> -> vector<8x9xf32>
    %c0_3 = arith.constant 0 : index
    %c0_4 = arith.constant 0 : index
    %3 = vector.load %arg3[%c0_3, %c0_4] : memref<1x9xf32, #tpu.memory_space<vmem>>, vector<1x9xf32>
    %4 = vector.broadcast %3 : vector<1x9xf32> to vector<8x9xf32>
    %5 = arith.addf %2, %4 : vector<8x9xf32>
    %c0_5 = arith.constant 0 : index
    %c0_6 = arith.constant 0 : index
    %6 = vector.load %arg4[%c0_5, %c0_6] : memref<8x9xf32, #tpu.memory_space<vmem>>, vector<8x9xf32>
    tpu.vector_store %arg4[%c0_5, %c0_6], %5 {strides = array<i32>} : memref<8x9xf32, #tpu.memory_space<vmem>>, vector<8x9xf32>,
    return
  }
  func.func @transform_0(%arg0: i32) -> (i32, i32) {
    %c0_i32 = arith.constant 0 : i32
    %c0_i32_0 = arith.constant 0 : i32
    return %arg0, %c0_i32 : i32, i32
  }
  func.func @transform_1(%arg0: i32) -> (i32, i32) {
    %c0_i32 = arith.constant 0 : i32
    %c0_i32_0 = arith.constant 0 : i32
    %c0_i32_1 = arith.constant 0 : i32
    return %c0_i32, %c0_i32_0 : i32, i32
  }
  func.func @transform_2(%arg0: i32) -> (i32, i32) {
    %c0_i32 = arith.constant 0 : i32
    %c0_i32_0 = arith.constant 0 : i32
    %c0_i32_1 = arith.constant 0 : i32
    return %c0_i32, %c0_i32_0 : i32, i32
  }
  func.func @transform_3(%arg0: i32) -> (i32, i32) {
    %c0_i32 = arith.constant 0 : i32
    %c0_i32_0 = arith.constant 0 : i32
    return %arg0, %c0_i32 : i32, i32
  }
}

</mosaic_0001>

<llo_original>
// kernel: personality_forward.1
$region0: #{personality_forward.1}
  #allocation0 [shape = 'u32[]', space=smem, size = 0x4, offset = 0x4, fixed_abs, tag = 'smem constant byte address 0x4 - core index']
  #allocation1 [shape = 'u32[144,128]{1,0:T(1,128)}', space=vmem, size = 0x12000, scoped, tag = 'internal scratch']
  %s0 = inlined_call_operand.vmem [shape: f32[8,39], index: 0, kind: input, shape index: {}]
  %s1 = inlined_call_operand.vmem [shape: f32[39,9], index: 1, kind: input, shape index: {}]
  %s2 = inlined_call_operand.vmem [shape: f32[1,9], index: 2, kind: input, shape index: {}]
  %s3 = inlined_call_operand.vmem [shape: f32[8,9], index: 3, kind: output, shape index: {}]
  %s4 = sld [smem:[#allocation0]]
  $region22: #{personality_forward.1} parent=0
    _
  %s6 = ssub.s32 1, %s4
  %s7 = scalar_select 0, %s6, %s4
  // Predicated region
  $region2: #{personality_forward.1} parent=0 // pred_check
    _
  $region3: #{personality_forward.1} parent=0 // pred_check_branch
    %9 = sbr.rel (0) target = $region5
  $region4: #{personality_forward.1} parent=0 // pred_region
    _
  $region5: #{personality_forward.1} parent=0 // pred_fallthru
    _
  // Predicated region
  $region6: #{personality_forward.1} parent=0 // pred_check
    _
  $region7: #{personality_forward.1} parent=0 // pred_check_branch
    %11 = sbr.rel (0) target = $region9
  $region8: #{personality_forward.1} parent=0 // pred_region
    _
  $region9: #{personality_forward.1} parent=0 // pred_fallthru
    _
  // Predicated region
  $region10: #{personality_forward.1} parent=0 // pred_check
    _
  $region11: #{personality_forward.1} parent=0 // pred_check_branch
    %13 = sbr.rel (0) target = $region13
  $region12: #{personality_forward.1} parent=0 // pred_region
    _
  $region13: #{personality_forward.1} parent=0 // pred_fallthru
    _
  %v14 = vld [vmem:[%s0] sm:$0xff]
  %v15 = vld [vmem:[%s1] sm:$0xff]
  %v16 = vld [vmem:[%s1 + $0x8] sm:$0xff]
  %v17 = vld [vmem:[%s1 + $0x10] sm:$0xff]
  %v18 = vld [vmem:[%s1 + $0x18] sm:$0xff]
  %v19 = vld [vmem:[%s1 + $0x20] sm:$0x7f]
  %v20 = vld [vmem:[%s2] sm:$0x1]
  %v22 = vlaneseq
  %v23 = vshrl.u32 %v22, 7
  %v24 = vsub.s32 0, %v23
  %v25 = vrot.slane %v20, %v24
  %vm27 = vcmask 318464
  %v29 = vsel %vm27, %v14, 0
  %vm31 = vcmask 1046528
  %v33 = vsel %vm31, %v19, 0
  %35 = vmatprep.subr.mxu0 0.0
  %36 = vmatpush1.msra.mxu0 0.0
  %37 = vmatprep.subr.mxu0 0.0
  %38 = vmatpush1.msra.mxu0 0.0
  %39 = vmatprep.subr.mxu0 0.0
  %40 = vmatpush1.msra.mxu0 0.0
  %41 = vmatprep.subr.mxu0 0.0
  %42 = vmatpush1.msra.mxu0 0.0
  %43 = vmatprep.subr.mxu0 0.0
  %44 = vmatpush1.msra.mxu0 0.0
  %45 = vmatprep.subr.mxu0 0.0
  %46 = vmatpush1.msra.mxu0 0.0
  %47 = vmatprep.subr.mxu0 0.0
  %48 = vmatpush1.msra.mxu0 0.0
  %49 = vmatprep.subr.mxu0 0.0
  %50 = vmatpush1.msra.mxu0 0.0
  %51 = vmatprep.subr.mxu0 0.0
  %52 = vmatpush1.msra.mxu0 0.0
  %53 = vmatprep.subr.mxu0 0.0
  %54 = vmatpush1.msra.mxu0 0.0
  %55 = vmatprep.subr.mxu0 0.0
  %56 = vmatpush1.msra.mxu0 0.0
  %57 = vmatprep.subr.mxu0 0.0
  %58 = vmatpush1.msra.mxu0 %v33
  %59 = vmatprep.subr.mxu0 0.0
  %60 = vmatpush1.msra.mxu0 %v18
  %61 = vmatprep.subr.mxu0 0.0
  %62 = vmatpush1.msra.mxu0 %v17
  %63 = vmatprep.subr.mxu0 0.0
  %64 = vmatpush1.msra.mxu0 %v16
  %65 = vmatprep.subr.mxu0 0.0
  %66 = vmatpush1.msra.mxu0 %v15
  %67 = vmatprep.subr.mxu0 0.0
  %68 = vmatpush2.msra.mxu0 0.0
  %69 = vmatprep.subr.mxu0 0.0
  %70 = vmatpush2.msra.mxu0 0.0
  %71 = vmatprep.subr.mxu0 0.0
  %72 = vmatpush2.msra.mxu0 0.0
  %73 = vmatprep.subr.mxu0 0.0
  %74 = vmatpush2.msra.mxu0 0.0
  %75 = vmatprep.subr.mxu0 0.0
  %76 = vmatpush2.msra.mxu0 0.0
  %77 = vmatprep.subr.mxu0 0.0
  %78 = vmatpush2.msra.mxu0 0.0
  %79 = vmatprep.subr.mxu0 0.0
  %80 = vmatpush2.msra.mxu0 0.0
  %81 = vmatprep.subr.mxu0 0.0
  %82 = vmatpush2.msra.mxu0 0.0
  %83 = vmatprep.subr.mxu0 0.0
  %84 = vmatpush2.msra.mxu0 0.0
  %85 = vmatprep.subr.mxu0 0.0
  %86 = vmatpush2.msra.mxu0 0.0
  %87 = vmatprep.subr.mxu0 0.0
  %88 = vmatpush2.msra.mxu0 0.0
  %89 = vmatprep.subr.mxu0 0.0
  %90 = vmatpush2.msra.mxu0 0.0
  %91 = vmatprep.subr.mxu0 0.0
  %92 = vmatpush2.msra.mxu0 0.0
  %93 = vmatprep.subr.mxu0 0.0
  %94 = vmatpush2.msra.mxu0 0.0
  %95 = vmatprep.subr.mxu0 0.0
  %96 = vmatpush2.msra.mxu0 0.0
  %97 = vmatprep.subr.mxu0 0.0
  %98 = vmatpush2.msra.mxu0 0.0
  %99 = vmatprep.mubr.f32.mxu0 0.0
  %100 = vmatmul.mubr.f32.gmra.mxu0 %v29
  %v101 = vpop.f32.mrf.mxu0
  %v102 = vadd.f32 %v25, %v101
  %v103 = vpop.f32.mrf.mxu0
  %104 = vdwg.mxu0
  %vm105 = vcmask 72704
  %106 = vst.msk [vmem:[%s3] sm:$0xff] %vm105, %v102
  // Predicated region
  $region14: #{personality_forward.1} parent=0 // pred_check
    _
  $region15: #{personality_forward.1} parent=0 // pred_check_branch
    %108 = sbr.rel (0) target = $region17
  $region16: #{personality_forward.1} parent=0 // pred_region
    _
  $region17: #{personality_forward.1} parent=0 // pred_fallthru
    _
  // Predicated region
  $region18: #{personality_forward.1} parent=0 // pred_check
    _
  $region19: #{personality_forward.1} parent=0 // pred_check_branch
    %110 = sbr.rel (0) target = $region21
  $region20: #{personality_forward.1} parent=0 // pred_region
    _
  $region21: #{personality_forward.1} parent=0 // pred_fallthru
    _

</llo_original>
